<compile_context>
chip_gen: v5e
topology: v5e:2x2
jax: 0.10.0
libtpu: 0.0.40
codegen_flags: <defaults>
</compile_context>

<pallas_src>
import functools

import jax
import jax.numpy as jnp
from jax import lax
from jax.experimental import pallas as pl
from jax.experimental.pallas import tpu as pltpu


def _sigmoid(x):
    # exp -> EUP, approx reciprocal -> EUP (vrcp); keeps the VPU slot free on
    # the serial recurrence path.
    return pl.reciprocal(1.0 + jnp.exp(-x), approx=True)


def lstm_chunk_kernel(zx_ref, wh_ref, h0_ref, c0_ref, h_out_ref, c_out_ref,
                      h_scr, c_scr, *, latent, t_blk):
    """One grid step == one chunk of t_blk timesteps of the LSTM recurrence.

    zx_ref : (t_blk, B, 4L) precomputed x-path pre-activations (+bias), f32
    wh_ref : (L, 4L)        hidden->gates weight, bf16, VMEM-resident
    h0_ref : (B, L)         initial hidden state
    c0_ref : (B, L)         initial cell state
    h_out_ref, c_out_ref : (t_blk, B, L) chunked per-step outputs
    h_scr, c_scr         : (B, L) VMEM scratch carrying the recurrence
    """
    tb = pl.program_id(0)

    @pl.when(tb == 0)
    def _():
        h_scr[...] = h0_ref[...]
        c_scr[...] = c0_ref[...]

    L = latent
    wh = wh_ref[...]                      # (L, 4L) bf16, hoisted out of the loop

    def step(t, carry):
        h, c = carry                      # f32 (B, L)
        # Fused gate pre-activations (B, 4L), gate order [f, i, m, o].
        # x-path + bias already folded into zx; only the h-path dot is serial.
        z = zx_ref[t] + jnp.dot(h.astype(wh.dtype), wh,
                                preferred_element_type=jnp.float32)
        f = _sigmoid(z[:, 0 * L:1 * L])
        i = _sigmoid(z[:, 1 * L:2 * L])
        g = jnp.tanh(z[:, 2 * L:3 * L])
        o = _sigmoid(z[:, 3 * L:4 * L])
        c_new = f * c + i * g
        h_new = o * jnp.tanh(c_new)
        # Stores land in the (t_blk, B, L) chunk block -> one writeback DMA
        # per output per grid step instead of two per timestep.
        h_out_ref[t] = h_new.astype(h_out_ref.dtype)
        c_out_ref[t] = c_new.astype(c_out_ref.dtype)
        return h_new, c_new

    h, c = lax.fori_loop(0, t_blk, step, (h_scr[...], c_scr[...]), unroll=True)

    # Carry the state to the next time chunk.
    h_scr[...] = h
    c_scr[...] = c


def lstm_forward(x_seq, h0, c0, w_h, b_h, w_x, b_x, *, t_blk=None):
    """Run the LSTM cell over a sequence inside one pallas_call.

    x_seq : (T, B, E)
    h0,c0 : (B, L)
    w_h[g]: (L, L)  PyTorch Linear layout (out, in), g in {"f","i","m","o"}
    b_h[g]: (L,)
    w_x[g]: (L, E)
    b_x[g]: (L,)
    Returns (c_seq, h_seq), each (T, B, L).
    """
    T, B, E = x_seq.shape
    L = h0.shape[1]
    gates = ("f", "i", "m", "o")
    if t_blk is None:
        t_blk = T
    assert T % t_blk == 0, "time chunk must divide sequence length"

    # One-time weight repack: gate order [f, i, m, o] along the lane axis.
    wh_t = jnp.concatenate([w_h[g].T for g in gates], axis=1).astype(jnp.bfloat16)  # (L, 4L)
    wx_t = jnp.concatenate([w_x[g].T for g in gates], axis=1).astype(jnp.float32)   # (E, 4L)
    bias = jnp.concatenate([b_h[g] + b_x[g] for g in gates]
                           ).reshape(1, 4 * L).astype(jnp.float32)                  # (1, 4L)

    # Hoisted x-path GEMM (+ fused bias): one big MXU-friendly matmul off the
    # serial chain.  Kept f32 (one-shot, not latency critical).
    zx = (x_seq.reshape(T * B, E).astype(jnp.float32) @ wx_t + bias
          ).reshape(T, B, 4 * L)

    kernel = functools.partial(lstm_chunk_kernel, latent=L, t_blk=t_blk)

    h_seq, c_seq = pl.pallas_call(
        kernel,
        out_shape=(jax.ShapeDtypeStruct((T, B, L), jnp.float32),
                   jax.ShapeDtypeStruct((T, B, L), jnp.float32)),
        grid=(T // t_blk,),
        in_specs=[
            pl.BlockSpec((t_blk, B, 4 * L), lambda tb: (tb, 0, 0)),  # Zx chunk, streamed
            pl.BlockSpec((L, 4 * L), lambda tb: (0, 0)),             # Wh^T resident (bf16)
            pl.BlockSpec((B, L), lambda tb: (0, 0)),                 # h0
            pl.BlockSpec((B, L), lambda tb: (0, 0)),                 # c0
        ],
        out_specs=[
            pl.BlockSpec((t_blk, B, L), lambda tb: (tb, 0, 0)),      # h chunk
            pl.BlockSpec((t_blk, B, L), lambda tb: (tb, 0, 0)),      # c chunk
        ],
        scratch_shapes=[
            pltpu.VMEM((B, L), jnp.float32),                         # h carry
            pltpu.VMEM((B, L), jnp.float32),                         # c carry
        ],
        compiler_params=pltpu.CompilerParams(
            # The time-chunk axis is a recurrence -> must stay "arbitrary".
            # (A single sequence has no independent parallelism; with multiple
            # sequences a leading "parallel" axis would engage v7x's 2nd TC.)
            dimension_semantics=("arbitrary",),
        ),
    )(zx, wh_t, h0.astype(jnp.float32), c0.astype(jnp.float32))

    return c_seq, h_seq


if __name__ == "__main__":
    # Small shapes consistent with the module's forward.
    batch = 2
    taille_embedding = 16   # x_t feature dim
    taille_latent = 32      # hidden / cell dim  (4L = 128 -> lane-dense gates)
    seq = 8                 # timesteps fused into one pallas_call (one chunk)

    key = jax.random.PRNGKey(0)
    keys = jax.random.split(key, 3 + 4)
    k_x, k_h, k_c = keys[0], keys[1], keys[2]
    wkeys = keys[3:]

    x_seq = jax.random.normal(k_x, (seq, batch, taille_embedding), dtype=jnp.float32)
    h0 = jax.random.normal(k_h, (batch, taille_latent), dtype=jnp.float32)
    c0 = jax.random.normal(k_c, (batch, taille_latent), dtype=jnp.float32)

    # Deterministic nn.Linear-style init: U(-1/sqrt(fan_in), 1/sqrt(fan_in)).
    gates = ("f", "i", "m", "o")
    bound_h = 1.0 / jnp.sqrt(taille_latent)
    bound_x = 1.0 / jnp.sqrt(taille_embedding)
    w_h, b_h, w_x, b_x = {}, {}, {}, {}
    for gi, g in enumerate(gates):
        kw_h, kb_h, kw_x, kb_x = jax.random.split(wkeys[gi], 4)
        w_h[g] = jax.random.uniform(kw_h, (taille_latent, taille_latent),
                                    minval=-bound_h, maxval=bound_h, dtype=jnp.float32)
        b_h[g] = jax.random.uniform(kb_h, (taille_latent,),
                                    minval=-bound_h, maxval=bound_h, dtype=jnp.float32)
        w_x[g] = jax.random.uniform(kw_x, (taille_latent, taille_embedding),
                                    minval=-bound_x, maxval=bound_x, dtype=jnp.float32)
        b_x[g] = jax.random.uniform(kb_x, (taille_latent,),
                                    minval=-bound_x, maxval=bound_x, dtype=jnp.float32)

    c_seq, h_seq = lstm_forward(x_seq, h0, c0, w_h, b_h, w_x, b_x)
    c_seq, h_seq = jax.block_until_ready((c_seq, h_seq))

    # Pure-JAX f32 reference: apply the cell equations step by step.
    def ref_cell(c, h, x):
        zf = h @ w_h["f"].T + b_h["f"] + x @ w_x["f"].T + b_x["f"]
        zi = h @ w_h["i"].T + b_h["i"] + x @ w_x["i"].T + b_x["i"]
        zm = h @ w_h["m"].T + b_h["m"] + x @ w_x["m"].T + b_x["m"]
        zo = h @ w_h["o"].T + b_h["o"] + x @ w_x["o"].T + b_x["o"]
        f = jax.nn.sigmoid(zf)
        i = jax.nn.sigmoid(zi)
        o = jax.nn.sigmoid(zo)
        c_new = f * c + i * jnp.tanh(zm)
        h_new = o * jnp.tanh(c_new)
        return c_new, h_new

    c_ref, h_ref = c0, h0
    c_refs, h_refs = [], []
    for t in range(seq):
        c_ref, h_ref = ref_cell(c_ref, h_ref, x_seq[t])
        c_refs.append(c_ref)
        h_refs.append(h_ref)
    c_ref_seq = jnp.stack(c_refs)
    h_ref_seq = jnp.stack(h_refs)

    assert c_seq.shape == (seq, batch, taille_latent)
    assert h_seq.shape == (seq, batch, taille_latent)
    # Tolerance reflects bf16 MXU operands on the recurrent h @ Wh path and the
    # EUP approximate reciprocal in sigmoid (f32 reference is exact); observed
    # error is a few e-3 with outputs bounded by tanh/sigmoid.
    assert jnp.allclose(c_seq, c_ref_seq, atol=2e-2, rtol=2e-2)
    assert jnp.allclose(h_seq, h_ref_seq, atol=2e-2, rtol=2e-2)

    print("KERNEL_OK")
</pallas_src>

<mosaic_0001>
module attributes {stable_mosaic.version = 11 : i64} {
  func.func @lstm_chunk_kernel(%arg0: i32, %arg1: memref<8x2x128xf32, #tpu.memory_space<vmem>>, %arg2: memref<32x128xbf16, #tpu.memory_space<vmem>>, %arg3: memref<2x32xf32, #tpu.memory_space<vmem>>, %arg4: memref<2x32xf32, #tpu.memory_space<vmem>>, %arg5: memref<8x2x32xf32, #tpu.memory_space<vmem>>, %arg6: memref<8x2x32xf32, #tpu.memory_space<vmem>>, %arg7: memref<2x32xf32, #tpu.memory_space<vmem>>, %arg8: memref<2x32xf32, #tpu.memory_space<vmem>>) attributes {dimension_semantics = [#tpu.dimension_semantics<arbitrary>], iteration_bounds = array<i64: 1>, scalar_prefetch = 0 : i64, scratch_operands = 2 : i64, tpu.core_type = #tpu.core_type<tc>, window_params = [{transform_indices = @transform_0, window_bounds = array<i64: 8, 2, 128>}, {pipeline_mode = #tpu.pipeline_mode<synchronous>, transform_indices = @transform_1, window_bounds = array<i64: 32, 128>}, {pipeline_mode = #tpu.pipeline_mode<synchronous>, transform_indices = @transform_2, window_bounds = array<i64: 2, 32>}, {pipeline_mode = #tpu.pipeline_mode<synchronous>, transform_indices = @transform_3, window_bounds = array<i64: 2, 32>}, {transform_indices = @transform_4, window_bounds = array<i64: 8, 2, 32>}, {transform_indices = @transform_5, window_bounds = array<i64: 8, 2, 32>}]} {
    %c0_i32 = arith.constant 0 : i32
    %0 = arith.cmpi eq, %arg0, %c0_i32 : i32
    %1 = arith.extui %0 : i1 to i32
    %c0_i32_0 = arith.constant 0 : i32
    %2 = arith.cmpi ne, %1, %c0_i32_0 : i32
    scf.if %2 {
      %c0_114 = arith.constant 0 : index
      %c0_115 = arith.constant 0 : index
      %344 = vector.load %arg3[%c0_114, %c0_115] : memref<2x32xf32, #tpu.memory_space<vmem>>, vector<2x32xf32>
      %c0_116 = arith.constant 0 : index
      %c0_117 = arith.constant 0 : index
      %345 = vector.load %arg7[%c0_116, %c0_117] : memref<2x32xf32, #tpu.memory_space<vmem>>, vector<2x32xf32>
      tpu.vector_store %arg7[%c0_116, %c0_117], %344 {strides = array<i32>} : memref<2x32xf32, #tpu.memory_space<vmem>>, vector<2x32xf32>,
      %c0_118 = arith.constant 0 : index
      %c0_119 = arith.constant 0 : index
      %346 = vector.load %arg4[%c0_118, %c0_119] : memref<2x32xf32, #tpu.memory_space<vmem>>, vector<2x32xf32>
      %c0_120 = arith.constant 0 : index
      %c0_121 = arith.constant 0 : index
      %347 = vector.load %arg8[%c0_120, %c0_121] : memref<2x32xf32, #tpu.memory_space<vmem>>, vector<2x32xf32>
      tpu.vector_store %arg8[%c0_120, %c0_121], %346 {strides = array<i32>} : memref<2x32xf32, #tpu.memory_space<vmem>>, vector<2x32xf32>,
    } else {
    }
    %c0 = arith.constant 0 : index
    %c0_1 = arith.constant 0 : index
    %3 = vector.load %arg2[%c0, %c0_1] : memref<32x128xbf16, #tpu.memory_space<vmem>>, vector<32x128xbf16>
    %c0_2 = arith.constant 0 : index
    %c0_3 = arith.constant 0 : index
    %4 = vector.load %arg7[%c0_2, %c0_3] : memref<2x32xf32, #tpu.memory_space<vmem>>, vector<2x32xf32>
    %c0_4 = arith.constant 0 : index
    %c0_5 = arith.constant 0 : index
    %5 = vector.load %arg8[%c0_4, %c0_5] : memref<2x32xf32, #tpu.memory_space<vmem>>, vector<2x32xf32>
    %c0_i32_6 = arith.constant 0 : i32
    %6 = arith.index_cast %c0_i32_6 : i32 to index
    %c0_7 = arith.constant 0 : index
    %c0_8 = arith.constant 0 : index
    %7 = vector.load %arg1[%6, %c0_7, %c0_8] : memref<8x2x128xf32, #tpu.memory_space<vmem>>, vector<1x2x128xf32>
    %8 = vector.shape_cast %7 : vector<1x2x128xf32> to vector<2x128xf32>
    %9 = arith.truncf %4 : vector<2x32xf32> to vector<2x32xbf16>
    %cst = arith.constant dense<0.000000e+00> : vector<2x128xf32>
    %10 = tpu.matmul %9, %3, %cst {dimension_numbers = #tpu.dot_dimension_numbers<[1], [0], [0], [1], [0, 0, 1, 1], [], []>} : vector<2x32xbf16>, vector<32x128xbf16>, vector<2x128xf32> -> vector<2x128xf32>
    %11 = arith.addf %8, %10 : vector<2x128xf32>
    %12 = vector.extract_strided_slice %11 {offsets = [0, 0], sizes = [2, 32], strides = [1, 1]} : vector<2x128xf32> to vector<2x32xf32>
    %cst_9 = arith.constant 0.000000e+00 : f32
    %13 = vector.broadcast %cst_9 : f32 to vector<2x32xf32>
    %14 = arith.subf %13, %12 : vector<2x32xf32>
    %15 = math.exp %14 : vector<2x32xf32>
    %cst_10 = arith.constant 1.000000e+00 : f32
    %16 = vector.broadcast %cst_10 : f32 to vector<2x32xf32>
    %17 = arith.addf %16, %15 : vector<2x32xf32>
    %18 = tpu.reciprocal %17 {approx = true} : vector<2x32xf32> -> vector<2x32xf32>
    %19 = vector.extract_strided_slice %11 {offsets = [0, 32], sizes = [2, 32], strides = [1, 1]} : vector<2x128xf32> to vector<2x32xf32>
    %cst_11 = arith.constant 0.000000e+00 : f32
    %20 = vector.broadcast %cst_11 : f32 to vector<2x32xf32>
    %21 = arith.subf %20, %19 : vector<2x32xf32>
    %22 = math.exp %21 : vector<2x32xf32>
    %cst_12 = arith.constant 1.000000e+00 : f32
    %23 = vector.broadcast %cst_12 : f32 to vector<2x32xf32>
    %24 = arith.addf %23, %22 : vector<2x32xf32>
    %25 = tpu.reciprocal %24 {approx = true} : vector<2x32xf32> -> vector<2x32xf32>
    %26 = vector.extract_strided_slice %11 {offsets = [0, 64], sizes = [2, 32], strides = [1, 1]} : vector<2x128xf32> to vector<2x32xf32>
    %27 = math.tanh %26 : vector<2x32xf32>
    %28 = vector.extract_strided_slice %11 {offsets = [0, 96], sizes = [2, 32], strides = [1, 1]} : vector<2x128xf32> to vector<2x32xf32>
    %cst_13 = arith.constant 0.000000e+00 : f32
    %29 = vector.broadcast %cst_13 : f32 to vector<2x32xf32>
    %30 = arith.subf %29, %28 : vector<2x32xf32>
    %31 = math.exp %30 : vector<2x32xf32>
    %cst_14 = arith.constant 1.000000e+00 : f32
    %32 = vector.broadcast %cst_14 : f32 to vector<2x32xf32>
    %33 = arith.addf %32, %31 : vector<2x32xf32>
    %34 = tpu.reciprocal %33 {approx = true} : vector<2x32xf32> -> vector<2x32xf32>
    %35 = arith.mulf %18, %5 : vector<2x32xf32>
    %36 = arith.mulf %25, %27 : vector<2x32xf32>
    %37 = arith.addf %35, %36 : vector<2x32xf32>
    %38 = math.tanh %37 : vector<2x32xf32>
    %39 = arith.mulf %34, %38 : vector<2x32xf32>
    %40 = arith.index_cast %c0_i32_6 : i32 to index
    %c0_15 = arith.constant 0 : index
    %c0_16 = arith.constant 0 : index
    %41 = vector.load %arg5[%40, %c0_15, %c0_16] : memref<8x2x32xf32, #tpu.memory_space<vmem>>, vector<1x2x32xf32>
    %42 = vector.shape_cast %41 : vector<1x2x32xf32> to vector<2x32xf32>
    %43 = vector.shape_cast %39 : vector<2x32xf32> to vector<1x2x32xf32>
    tpu.vector_store %arg5[%40, %c0_15, %c0_16], %43 {strides = array<i32>} : memref<8x2x32xf32, #tpu.memory_space<vmem>>, vector<1x2x32xf32>,
    %44 = arith.index_cast %c0_i32_6 : i32 to index
    %c0_17 = arith.constant 0 : index
    %c0_18 = arith.constant 0 : index
    %45 = vector.load %arg6[%44, %c0_17, %c0_18] : memref<8x2x32xf32, #tpu.memory_space<vmem>>, vector<1x2x32xf32>
    %46 = vector.shape_cast %45 : vector<1x2x32xf32> to vector<2x32xf32>
    %47 = vector.shape_cast %37 : vector<2x32xf32> to vector<1x2x32xf32>
    tpu.vector_store %arg6[%44, %c0_17, %c0_18], %47 {strides = array<i32>} : memref<8x2x32xf32, #tpu.memory_space<vmem>>, vector<1x2x32xf32>,
    %c1_i32 = arith.constant 1 : i32
    %48 = arith.index_cast %c1_i32 : i32 to index
    %c0_19 = arith.constant 0 : index
    %c0_20 = arith.constant 0 : index
    %49 = vector.load %arg1[%48, %c0_19, %c0_20] : memref<8x2x128xf32, #tpu.memory_space<vmem>>, vector<1x2x128xf32>
    %50 = vector.shape_cast %49 : vector<1x2x128xf32> to vector<2x128xf32>
    %51 = arith.truncf %39 : vector<2x32xf32> to vector<2x32xbf16>
    %cst_21 = arith.constant dense<0.000000e+00> : vector<2x128xf32>
    %52 = tpu.matmul %51, %3, %cst_21 {dimension_numbers = #tpu.dot_dimension_numbers<[1], [0], [0], [1], [0, 0, 1, 1], [], []>} : vector<2x32xbf16>, vector<32x128xbf16>, vector<2x128xf32> -> vector<2x128xf32>
    %53 = arith.addf %50, %52 : vector<2x128xf32>
    %54 = vector.extract_strided_slice %53 {offsets = [0, 0], sizes = [2, 32], strides = [1, 1]} : vector<2x128xf32> to vector<2x32xf32>
    %cst_22 = arith.constant 0.000000e+00 : f32
    %55 = vector.broadcast %cst_22 : f32 to vector<2x32xf32>
    %56 = arith.subf %55, %54 : vector<2x32xf32>
    %57 = math.exp %56 : vector<2x32xf32>
    %cst_23 = arith.constant 1.000000e+00 : f32
    %58 = vector.broadcast %cst_23 : f32 to vector<2x32xf32>
    %59 = arith.addf %58, %57 : vector<2x32xf32>
    %60 = tpu.reciprocal %59 {approx = true} : vector<2x32xf32> -> vector<2x32xf32>
    %61 = vector.extract_strided_slice %53 {offsets = [0, 32], sizes = [2, 32], strides = [1, 1]} : vector<2x128xf32> to vector<2x32xf32>
    %cst_24 = arith.constant 0.000000e+00 : f32
    %62 = vector.broadcast %cst_24 : f32 to vector<2x32xf32>
    %63 = arith.subf %62, %61 : vector<2x32xf32>
    %64 = math.exp %63 : vector<2x32xf32>
    %cst_25 = arith.constant 1.000000e+00 : f32
    %65 = vector.broadcast %cst_25 : f32 to vector<2x32xf32>
    %66 = arith.addf %65, %64 : vector<2x32xf32>
    %67 = tpu.reciprocal %66 {approx = true} : vector<2x32xf32> -> vector<2x32xf32>
    %68 = vector.extract_strided_slice %53 {offsets = [0, 64], sizes = [2, 32], strides = [1, 1]} : vector<2x128xf32> to vector<2x32xf32>
    %69 = math.tanh %68 : vector<2x32xf32>
    %70 = vector.extract_strided_slice %53 {offsets = [0, 96], sizes = [2, 32], strides = [1, 1]} : vector<2x128xf32> to vector<2x32xf32>
    %cst_26 = arith.constant 0.000000e+00 : f32
    %71 = vector.broadcast %cst_26 : f32 to vector<2x32xf32>
    %72 = arith.subf %71, %70 : vector<2x32xf32>
    %73 = math.exp %72 : vector<2x32xf32>
    %cst_27 = arith.constant 1.000000e+00 : f32
    %74 = vector.broadcast %cst_27 : f32 to vector<2x32xf32>
    %75 = arith.addf %74, %73 : vector<2x32xf32>
    %76 = tpu.reciprocal %75 {approx = true} : vector<2x32xf32> -> vector<2x32xf32>
    %77 = arith.mulf %60, %37 : vector<2x32xf32>
    %78 = arith.mulf %67, %69 : vector<2x32xf32>
    %79 = arith.addf %77, %78 : vector<2x32xf32>
    %80 = math.tanh %79 : vector<2x32xf32>
    %81 = arith.mulf %76, %80 : vector<2x32xf32>
    %82 = arith.index_cast %c1_i32 : i32 to index
    %c0_28 = arith.constant 0 : index
    %c0_29 = arith.constant 0 : index
    %83 = vector.load %arg5[%82, %c0_28, %c0_29] : memref<8x2x32xf32, #tpu.memory_space<vmem>>, vector<1x2x32xf32>
    %84 = vector.shape_cast %83 : vector<1x2x32xf32> to vector<2x32xf32>
    %85 = vector.shape_cast %81 : vector<2x32xf32> to vector<1x2x32xf32>
    tpu.vector_store %arg5[%82, %c0_28, %c0_29], %85 {strides = array<i32>} : memref<8x2x32xf32, #tpu.memory_space<vmem>>, vector<1x2x32xf32>,
    %86 = arith.index_cast %c1_i32 : i32 to index
    %c0_30 = arith.constant 0 : index
    %c0_31 = arith.constant 0 : index
    %87 = vector.load %arg6[%86, %c0_30, %c0_31] : memref<8x2x32xf32, #tpu.memory_space<vmem>>, vector<1x2x32xf32>
    %88 = vector.shape_cast %87 : vector<1x2x32xf32> to vector<2x32xf32>
    %89 = vector.shape_cast %79 : vector<2x32xf32> to vector<1x2x32xf32>
    tpu.vector_store %arg6[%86, %c0_30, %c0_31], %89 {strides = array<i32>} : memref<8x2x32xf32, #tpu.memory_space<vmem>>, vector<1x2x32xf32>,
    %c2_i32 = arith.constant 2 : i32
    %90 = arith.index_cast %c2_i32 : i32 to index
    %c0_32 = arith.constant 0 : index
    %c0_33 = arith.constant 0 : index
    %91 = vector.load %arg1[%90, %c0_32, %c0_33] : memref<8x2x128xf32, #tpu.memory_space<vmem>>, vector<1x2x128xf32>
    %92 = vector.shape_cast %91 : vector<1x2x128xf32> to vector<2x128xf32>
    %93 = arith.truncf %81 : vector<2x32xf32> to vector<2x32xbf16>
    %cst_34 = arith.constant dense<0.000000e+00> : vector<2x128xf32>
    %94 = tpu.matmul %93, %3, %cst_34 {dimension_numbers = #tpu.dot_dimension_numbers<[1], [0], [0], [1], [0, 0, 1, 1], [], []>} : vector<2x32xbf16>, vector<32x128xbf16>, vector<2x128xf32> -> vector<2x128xf32>
    %95 = arith.addf %92, %94 : vector<2x128xf32>
    %96 = vector.extract_strided_slice %95 {offsets = [0, 0], sizes = [2, 32], strides = [1, 1]} : vector<2x128xf32> to vector<2x32xf32>
    %cst_35 = arith.constant 0.000000e+00 : f32
    %97 = vector.broadcast %cst_35 : f32 to vector<2x32xf32>
    %98 = arith.subf %97, %96 : vector<2x32xf32>
    %99 = math.exp %98 : vector<2x32xf32>
    %cst_36 = arith.constant 1.000000e+00 : f32
    %100 = vector.broadcast %cst_36 : f32 to vector<2x32xf32>
    %101 = arith.addf %100, %99 : vector<2x32xf32>
    %102 = tpu.reciprocal %101 {approx = true} : vector<2x32xf32> -> vector<2x32xf32>
    %103 = vector.extract_strided_slice %95 {offsets = [0, 32], sizes = [2, 32], strides = [1, 1]} : vector<2x128xf32> to vector<2x32xf32>
    %cst_37 = arith.constant 0.000000e+00 : f32
    %104 = vector.broadcast %cst_37 : f32 to vector<2x32xf32>
    %105 = arith.subf %104, %103 : vector<2x32xf32>
    %106 = math.exp %105 : vector<2x32xf32>
    %cst_38 = arith.constant 1.000000e+00 : f32
    %107 = vector.broadcast %cst_38 : f32 to vector<2x32xf32>
    %108 = arith.addf %107, %106 : vector<2x32xf32>
    %109 = tpu.reciprocal %108 {approx = true} : vector<2x32xf32> -> vector<2x32xf32>
    %110 = vector.extract_strided_slice %95 {offsets = [0, 64], sizes = [2, 32], strides = [1, 1]} : vector<2x128xf32> to vector<2x32xf32>
    %111 = math.tanh %110 : vector<2x32xf32>
    %112 = vector.extract_strided_slice %95 {offsets = [0, 96], sizes = [2, 32], strides = [1, 1]} : vector<2x128xf32> to vector<2x32xf32>
    %cst_39 = arith.constant 0.000000e+00 : f32
    %113 = vector.broadcast %cst_39 : f32 to vector<2x32xf32>
    %114 = arith.subf %113, %112 : vector<2x32xf32>
    %115 = math.exp %114 : vector<2x32xf32>
    %cst_40 = arith.constant 1.000000e+00 : f32
    %116 = vector.broadcast %cst_40 : f32 to vector<2x32xf32>
    %117 = arith.addf %116, %115 : vector<2x32xf32>
    %118 = tpu.reciprocal %117 {approx = true} : vector<2x32xf32> -> vector<2x32xf32>
    %119 = arith.mulf %102, %79 : vector<2x32xf32>
    %120 = arith.mulf %109, %111 : vector<2x32xf32>
    %121 = arith.addf %119, %120 : vector<2x32xf32>
    %122 = math.tanh %121 : vector<2x32xf32>
    %123 = arith.mulf %118, %122 : vector<2x32xf32>
    %124 = arith.index_cast %c2_i32 : i32 to index
    %c0_41 = arith.constant 0 : index
    %c0_42 = arith.constant 0 : index
    %125 = vector.load %arg5[%124, %c0_41, %c0_42] : memref<8x2x32xf32, #tpu.memory_space<vmem>>, vector<1x2x32xf32>
    %126 = vector.shape_cast %125 : vector<1x2x32xf32> to vector<2x32xf32>
    %127 = vector.shape_cast %123 : vector<2x32xf32> to vector<1x2x32xf32>
    tpu.vector_store %arg5[%124, %c0_41, %c0_42], %127 {strides = array<i32>} : memref<8x2x32xf32, #tpu.memory_space<vmem>>, vector<1x2x32xf32>,
    %128 = arith.index_cast %c2_i32 : i32 to index
    %c0_43 = arith.constant 0 : index
    %c0_44 = arith.constant 0 : index
    %129 = vector.load %arg6[%128, %c0_43, %c0_44] : memref<8x2x32xf32, #tpu.memory_space<vmem>>, vector<1x2x32xf32>
    %130 = vector.shape_cast %129 : vector<1x2x32xf32> to vector<2x32xf32>
    %131 = vector.shape_cast %121 : vector<2x32xf32> to vector<1x2x32xf32>
    tpu.vector_store %arg6[%128, %c0_43, %c0_44], %131 {strides = array<i32>} : memref<8x2x32xf32, #tpu.memory_space<vmem>>, vector<1x2x32xf32>,
    %c3_i32 = arith.constant 3 : i32
    %132 = arith.index_cast %c3_i32 : i32 to index
    %c0_45 = arith.constant 0 : index
    %c0_46 = arith.constant 0 : index
    %133 = vector.load %arg1[%132, %c0_45, %c0_46] : memref<8x2x128xf32, #tpu.memory_space<vmem>>, vector<1x2x128xf32>
    %134 = vector.shape_cast %133 : vector<1x2x128xf32> to vector<2x128xf32>
    %135 = arith.truncf %123 : vector<2x32xf32> to vector<2x32xbf16>
    %cst_47 = arith.constant dense<0.000000e+00> : vector<2x128xf32>
    %136 = tpu.matmul %135, %3, %cst_47 {dimension_numbers = #tpu.dot_dimension_numbers<[1], [0], [0], [1], [0, 0, 1, 1], [], []>} : vector<2x32xbf16>, vector<32x128xbf16>, vector<2x128xf32> -> vector<2x128xf32>
    %137 = arith.addf %134, %136 : vector<2x128xf32>
    %138 = vector.extract_strided_slice %137 {offsets = [0, 0], sizes = [2, 32], strides = [1, 1]} : vector<2x128xf32> to vector<2x32xf32>
    %cst_48 = arith.constant 0.000000e+00 : f32
    %139 = vector.broadcast %cst_48 : f32 to vector<2x32xf32>
    %140 = arith.subf %139, %138 : vector<2x32xf32>
    %141 = math.exp %140 : vector<2x32xf32>
    %cst_49 = arith.constant 1.000000e+00 : f32
    %142 = vector.broadcast %cst_49 : f32 to vector<2x32xf32>
    %143 = arith.addf %142, %141 : vector<2x32xf32>
    %144 = tpu.reciprocal %143 {approx = true} : vector<2x32xf32> -> vector<2x32xf32>
    %145 = vector.extract_strided_slice %137 {offsets = [0, 32], sizes = [2, 32], strides = [1, 1]} : vector<2x128xf32> to vector<2x32xf32>
    %cst_50 = arith.constant 0.000000e+00 : f32
    %146 = vector.broadcast %cst_50 : f32 to vector<2x32xf32>
    %147 = arith.subf %146, %145 : vector<2x32xf32>
    %148 = math.exp %147 : vector<2x32xf32>
    %cst_51 = arith.constant 1.000000e+00 : f32
    %149 = vector.broadcast %cst_51 : f32 to vector<2x32xf32>
    %150 = arith.addf %149, %148 : vector<2x32xf32>
    %151 = tpu.reciprocal %150 {approx = true} : vector<2x32xf32> -> vector<2x32xf32>
    %152 = vector.extract_strided_slice %137 {offsets = [0, 64], sizes = [2, 32], strides = [1, 1]} : vector<2x128xf32> to vector<2x32xf32>
    %153 = math.tanh %152 : vector<2x32xf32>
    %154 = vector.extract_strided_slice %137 {offsets = [0, 96], sizes = [2, 32], strides = [1, 1]} : vector<2x128xf32> to vector<2x32xf32>
    %cst_52 = arith.constant 0.000000e+00 : f32
    %155 = vector.broadcast %cst_52 : f32 to vector<2x32xf32>
    %156 = arith.subf %155, %154 : vector<2x32xf32>
    %157 = math.exp %156 : vector<2x32xf32>
    %cst_53 = arith.constant 1.000000e+00 : f32
    %158 = vector.broadcast %cst_53 : f32 to vector<2x32xf32>
    %159 = arith.addf %158, %157 : vector<2x32xf32>
    %160 = tpu.reciprocal %159 {approx = true} : vector<2x32xf32> -> vector<2x32xf32>
    %161 = arith.mulf %144, %121 : vector<2x32xf32>
    %162 = arith.mulf %151, %153 : vector<2x32xf32>
    %163 = arith.addf %161, %162 : vector<2x32xf32>
    %164 = math.tanh %163 : vector<2x32xf32>
    %165 = arith.mulf %160, %164 : vector<2x32xf32>
    %166 = arith.index_cast %c3_i32 : i32 to index
    %c0_54 = arith.constant 0 : index
    %c0_55 = arith.constant 0 : index
    %167 = vector.load %arg5[%166, %c0_54, %c0_55] : memref<8x2x32xf32, #tpu.memory_space<vmem>>, vector<1x2x32xf32>
    %168 = vector.shape_cast %167 : vector<1x2x32xf32> to vector<2x32xf32>
    %169 = vector.shape_cast %165 : vector<2x32xf32> to vector<1x2x32xf32>
    tpu.vector_store %arg5[%166, %c0_54, %c0_55], %169 {strides = array<i32>} : memref<8x2x32xf32, #tpu.memory_space<vmem>>, vector<1x2x32xf32>,
    %170 = arith.index_cast %c3_i32 : i32 to index
    %c0_56 = arith.constant 0 : index
    %c0_57 = arith.constant 0 : index
    %171 = vector.load %arg6[%170, %c0_56, %c0_57] : memref<8x2x32xf32, #tpu.memory_space<vmem>>, vector<1x2x32xf32>
    %172 = vector.shape_cast %171 : vector<1x2x32xf32> to vector<2x32xf32>
    %173 = vector.shape_cast %163 : vector<2x32xf32> to vector<1x2x32xf32>
    tpu.vector_store %arg6[%170, %c0_56, %c0_57], %173 {strides = array<i32>} : memref<8x2x32xf32, #tpu.memory_space<vmem>>, vector<1x2x32xf32>,
    %c4_i32 = arith.constant 4 : i32
    %174 = arith.index_cast %c4_i32 : i32 to index
    %c0_58 = arith.constant 0 : index
    %c0_59 = arith.constant 0 : index
    %175 = vector.load %arg1[%174, %c0_58, %c0_59] : memref<8x2x128xf32, #tpu.memory_space<vmem>>, vector<1x2x128xf32>
    %176 = vector.shape_cast %175 : vector<1x2x128xf32> to vector<2x128xf32>
    %177 = arith.truncf %165 : vector<2x32xf32> to vector<2x32xbf16>
    %cst_60 = arith.constant dense<0.000000e+00> : vector<2x128xf32>
    %178 = tpu.matmul %177, %3, %cst_60 {dimension_numbers = #tpu.dot_dimension_numbers<[1], [0], [0], [1], [0, 0, 1, 1], [], []>} : vector<2x32xbf16>, vector<32x128xbf16>, vector<2x128xf32> -> vector<2x128xf32>
    %179 = arith.addf %176, %178 : vector<2x128xf32>
    %180 = vector.extract_strided_slice %179 {offsets = [0, 0], sizes = [2, 32], strides = [1, 1]} : vector<2x128xf32> to vector<2x32xf32>
    %cst_61 = arith.constant 0.000000e+00 : f32
    %181 = vector.broadcast %cst_61 : f32 to vector<2x32xf32>
    %182 = arith.subf %181, %180 : vector<2x32xf32>
    %183 = math.exp %182 : vector<2x32xf32>
    %cst_62 = arith.constant 1.000000e+00 : f32
    %184 = vector.broadcast %cst_62 : f32 to vector<2x32xf32>
    %185 = arith.addf %184, %183 : vector<2x32xf32>
    %186 = tpu.reciprocal %185 {approx = true} : vector<2x32xf32> -> vector<2x32xf32>
    %187 = vector.extract_strided_slice %179 {offsets = [0, 32], sizes = [2, 32], strides = [1, 1]} : vector<2x128xf32> to vector<2x32xf32>
    %cst_63 = arith.constant 0.000000e+00 : f32
    %188 = vector.broadcast %cst_63 : f32 to vector<2x32xf32>
    %189 = arith.subf %188, %187 : vector<2x32xf32>
    %190 = math.exp %189 : vector<2x32xf32>
    %cst_64 = arith.constant 1.000000e+00 : f32
    %191 = vector.broadcast %cst_64 : f32 to vector<2x32xf32>
    %192 = arith.addf %191, %190 : vector<2x32xf32>
    %193 = tpu.reciprocal %192 {approx = true} : vector<2x32xf32> -> vector<2x32xf32>
    %194 = vector.extract_strided_slice %179 {offsets = [0, 64], sizes = [2, 32], strides = [1, 1]} : vector<2x128xf32> to vector<2x32xf32>
    %195 = math.tanh %194 : vector<2x32xf32>
    %196 = vector.extract_strided_slice %179 {offsets = [0, 96], sizes = [2, 32], strides = [1, 1]} : vector<2x128xf32> to vector<2x32xf32>
    %cst_65 = arith.constant 0.000000e+00 : f32
    %197 = vector.broadcast %cst_65 : f32 to vector<2x32xf32>
    %198 = arith.subf %197, %196 : vector<2x32xf32>
    %199 = math.exp %198 : vector<2x32xf32>
    %cst_66 = arith.constant 1.000000e+00 : f32
    %200 = vector.broadcast %cst_66 : f32 to vector<2x32xf32>
    %201 = arith.addf %200, %199 : vector<2x32xf32>
    %202 = tpu.reciprocal %201 {approx = true} : vector<2x32xf32> -> vector<2x32xf32>
    %203 = arith.mulf %186, %163 : vector<2x32xf32>
    %204 = arith.mulf %193, %195 : vector<2x32xf32>
    %205 = arith.addf %203, %204 : vector<2x32xf32>
    %206 = math.tanh %205 : vector<2x32xf32>
    %207 = arith.mulf %202, %206 : vector<2x32xf32>
    %208 = arith.index_cast %c4_i32 : i32 to index
    %c0_67 = arith.constant 0 : index
    %c0_68 = arith.constant 0 : index
    %209 = vector.load %arg5[%208, %c0_67, %c0_68] : memref<8x2x32xf32, #tpu.memory_space<vmem>>, vector<1x2x32xf32>
    %210 = vector.shape_cast %209 : vector<1x2x32xf32> to vector<2x32xf32>
    %211 = vector.shape_cast %207 : vector<2x32xf32> to vector<1x2x32xf32>
    tpu.vector_store %arg5[%208, %c0_67, %c0_68], %211 {strides = array<i32>} : memref<8x2x32xf32, #tpu.memory_space<vmem>>, vector<1x2x32xf32>,
    %212 = arith.index_cast %c4_i32 : i32 to index
    %c0_69 = arith.constant 0 : index
    %c0_70 = arith.constant 0 : index
    %213 = vector.load %arg6[%212, %c0_69, %c0_70] : memref<8x2x32xf32, #tpu.memory_space<vmem>>, vector<1x2x32xf32>
    %214 = vector.shape_cast %213 : vector<1x2x32xf32> to vector<2x32xf32>
    %215 = vector.shape_cast %205 : vector<2x32xf32> to vector<1x2x32xf32>
    tpu.vector_store %arg6[%212, %c0_69, %c0_70], %215 {strides = array<i32>} : memref<8x2x32xf32, #tpu.memory_space<vmem>>, vector<1x2x32xf32>,
    %c5_i32 = arith.constant 5 : i32
    %216 = arith.index_cast %c5_i32 : i32 to index
    %c0_71 = arith.constant 0 : index
    %c0_72 = arith.constant 0 : index
    %217 = vector.load %arg1[%216, %c0_71, %c0_72] : memref<8x2x128xf32, #tpu.memory_space<vmem>>, vector<1x2x128xf32>
    %218 = vector.shape_cast %217 : vector<1x2x128xf32> to vector<2x128xf32>
    %219 = arith.truncf %207 : vector<2x32xf32> to vector<2x32xbf16>
    %cst_73 = arith.constant dense<0.000000e+00> : vector<2x128xf32>
    %220 = tpu.matmul %219, %3, %cst_73 {dimension_numbers = #tpu.dot_dimension_numbers<[1], [0], [0], [1], [0, 0, 1, 1], [], []>} : vector<2x32xbf16>, vector<32x128xbf16>, vector<2x128xf32> -> vector<2x128xf32>
    %221 = arith.addf %218, %220 : vector<2x128xf32>
    %222 = vector.extract_strided_slice %221 {offsets = [0, 0], sizes = [2, 32], strides = [1, 1]} : vector<2x128xf32> to vector<2x32xf32>
    %cst_74 = arith.constant 0.000000e+00 : f32
    %223 = vector.broadcast %cst_74 : f32 to vector<2x32xf32>
    %224 = arith.subf %223, %222 : vector<2x32xf32>
    %225 = math.exp %224 : vector<2x32xf32>
    %cst_75 = arith.constant 1.000000e+00 : f32
    %226 = vector.broadcast %cst_75 : f32 to vector<2x32xf32>
    %227 = arith.addf %226, %225 : vector<2x32xf32>
    %228 = tpu.reciprocal %227 {approx = true} : vector<2x32xf32> -> vector<2x32xf32>
    %229 = vector.extract_strided_slice %221 {offsets = [0, 32], sizes = [2, 32], strides = [1, 1]} : vector<2x128xf32> to vector<2x32xf32>
    %cst_76 = arith.constant 0.000000e+00 : f32
    %230 = vector.broadcast %cst_76 : f32 to vector<2x32xf32>
    %231 = arith.subf %230, %229 : vector<2x32xf32>
    %232 = math.exp %231 : vector<2x32xf32>
    %cst_77 = arith.constant 1.000000e+00 : f32
    %233 = vector.broadcast %cst_77 : f32 to vector<2x32xf32>
    %234 = arith.addf %233, %232 : vector<2x32xf32>
    %235 = tpu.reciprocal %234 {approx = true} : vector<2x32xf32> -> vector<2x32xf32>
    %236 = vector.extract_strided_slice %221 {offsets = [0, 64], sizes = [2, 32], strides = [1, 1]} : vector<2x128xf32> to vector<2x32xf32>
    %237 = math.tanh %236 : vector<2x32xf32>
    %238 = vector.extract_strided_slice %221 {offsets = [0, 96], sizes = [2, 32], strides = [1, 1]} : vector<2x128xf32> to vector<2x32xf32>
    %cst_78 = arith.constant 0.000000e+00 : f32
    %239 = vector.broadcast %cst_78 : f32 to vector<2x32xf32>
    %240 = arith.subf %239, %238 : vector<2x32xf32>
    %241 = math.exp %240 : vector<2x32xf32>
    %cst_79 = arith.constant 1.000000e+00 : f32
    %242 = vector.broadcast %cst_79 : f32 to vector<2x32xf32>
    %243 = arith.addf %242, %241 : vector<2x32xf32>
    %244 = tpu.reciprocal %243 {approx = true} : vector<2x32xf32> -> vector<2x32xf32>
    %245 = arith.mulf %228, %205 : vector<2x32xf32>
    %246 = arith.mulf %235, %237 : vector<2x32xf32>
    %247 = arith.addf %245, %246 : vector<2x32xf32>
    %248 = math.tanh %247 : vector<2x32xf32>
    %249 = arith.mulf %244, %248 : vector<2x32xf32>
    %250 = arith.index_cast %c5_i32 : i32 to index
    %c0_80 = arith.constant 0 : index
    %c0_81 = arith.constant 0 : index
    %251 = vector.load %arg5[%250, %c0_80, %c0_81] : memref<8x2x32xf32, #tpu.memory_space<vmem>>, vector<1x2x32xf32>
    %252 = vector.shape_cast %251 : vector<1x2x32xf32> to vector<2x32xf32>
    %253 = vector.shape_cast %249 : vector<2x32xf32> to vector<1x2x32xf32>
    tpu.vector_store %arg5[%250, %c0_80, %c0_81], %253 {strides = array<i32>} : memref<8x2x32xf32, #tpu.memory_space<vmem>>, vector<1x2x32xf32>,
    %254 = arith.index_cast %c5_i32 : i32 to index
    %c0_82 = arith.constant 0 : index
    %c0_83 = arith.constant 0 : index
    %255 = vector.load %arg6[%254, %c0_82, %c0_83] : memref<8x2x32xf32, #tpu.memory_space<vmem>>, vector<1x2x32xf32>
    %256 = vector.shape_cast %255 : vector<1x2x32xf32> to vector<2x32xf32>
    %257 = vector.shape_cast %247 : vector<2x32xf32> to vector<1x2x32xf32>
    tpu.vector_store %arg6[%254, %c0_82, %c0_83], %257 {strides = array<i32>} : memref<8x2x32xf32, #tpu.memory_space<vmem>>, vector<1x2x32xf32>,
    %c6_i32 = arith.constant 6 : i32
    %258 = arith.index_cast %c6_i32 : i32 to index
    %c0_84 = arith.constant 0 : index
    %c0_85 = arith.constant 0 : index
    %259 = vector.load %arg1[%258, %c0_84, %c0_85] : memref<8x2x128xf32, #tpu.memory_space<vmem>>, vector<1x2x128xf32>
    %260 = vector.shape_cast %259 : vector<1x2x128xf32> to vector<2x128xf32>
    %261 = arith.truncf %249 : vector<2x32xf32> to vector<2x32xbf16>
    %cst_86 = arith.constant dense<0.000000e+00> : vector<2x128xf32>
    %262 = tpu.matmul %261, %3, %cst_86 {dimension_numbers = #tpu.dot_dimension_numbers<[1], [0], [0], [1], [0, 0, 1, 1], [], []>} : vector<2x32xbf16>, vector<32x128xbf16>, vector<2x128xf32> -> vector<2x128xf32>
    %263 = arith.addf %260, %262 : vector<2x128xf32>
    %264 = vector.extract_strided_slice %263 {offsets = [0, 0], sizes = [2, 32], strides = [1, 1]} : vector<2x128xf32> to vector<2x32xf32>
    %cst_87 = arith.constant 0.000000e+00 : f32
    %265 = vector.broadcast %cst_87 : f32 to vector<2x32xf32>
    %266 = arith.subf %265, %264 : vector<2x32xf32>
    %267 = math.exp %266 : vector<2x32xf32>
    %cst_88 = arith.constant 1.000000e+00 : f32
    %268 = vector.broadcast %cst_88 : f32 to vector<2x32xf32>
    %269 = arith.addf %268, %267 : vector<2x32xf32>
    %270 = tpu.reciprocal %269 {approx = true} : vector<2x32xf32> -> vector<2x32xf32>
    %271 = vector.extract_strided_slice %263 {offsets = [0, 32], sizes = [2, 32], strides = [1, 1]} : vector<2x128xf32> to vector<2x32xf32>
    %cst_89 = arith.constant 0.000000e+00 : f32
    %272 = vector.broadcast %cst_89 : f32 to vector<2x32xf32>
    %273 = arith.subf %272, %271 : vector<2x32xf32>
    %274 = math.exp %273 : vector<2x32xf32>
    %cst_90 = arith.constant 1.000000e+00 : f32
    %275 = vector.broadcast %cst_90 : f32 to vector<2x32xf32>
    %276 = arith.addf %275, %274 : vector<2x32xf32>
    %277 = tpu.reciprocal %276 {approx = true} : vector<2x32xf32> -> vector<2x32xf32>
    %278 = vector.extract_strided_slice %263 {offsets = [0, 64], sizes = [2, 32], strides = [1, 1]} : vector<2x128xf32> to vector<2x32xf32>
    %279 = math.tanh %278 : vector<2x32xf32>
    %280 = vector.extract_strided_slice %263 {offsets = [0, 96], sizes = [2, 32], strides = [1, 1]} : vector<2x128xf32> to vector<2x32xf32>
    %cst_91 = arith.constant 0.000000e+00 : f32
    %281 = vector.broadcast %cst_91 : f32 to vector<2x32xf32>
    %282 = arith.subf %281, %280 : vector<2x32xf32>
    %283 = math.exp %282 : vector<2x32xf32>
    %cst_92 = arith.constant 1.000000e+00 : f32
    %284 = vector.broadcast %cst_92 : f32 to vector<2x32xf32>
    %285 = arith.addf %284, %283 : vector<2x32xf32>
    %286 = tpu.reciprocal %285 {approx = true} : vector<2x32xf32> -> vector<2x32xf32>
    %287 = arith.mulf %270, %247 : vector<2x32xf32>
    %288 = arith.mulf %277, %279 : vector<2x32xf32>
    %289 = arith.addf %287, %288 : vector<2x32xf32>
    %290 = math.tanh %289 : vector<2x32xf32>
    %291 = arith.mulf %286, %290 : vector<2x32xf32>
    %292 = arith.index_cast %c6_i32 : i32 to index
    %c0_93 = arith.constant 0 : index
    %c0_94 = arith.constant 0 : index
    %293 = vector.load %arg5[%292, %c0_93, %c0_94] : memref<8x2x32xf32, #tpu.memory_space<vmem>>, vector<1x2x32xf32>
    %294 = vector.shape_cast %293 : vector<1x2x32xf32> to vector<2x32xf32>
    %295 = vector.shape_cast %291 : vector<2x32xf32> to vector<1x2x32xf32>
    tpu.vector_store %arg5[%292, %c0_93, %c0_94], %295 {strides = array<i32>} : memref<8x2x32xf32, #tpu.memory_space<vmem>>, vector<1x2x32xf32>,
    %296 = arith.index_cast %c6_i32 : i32 to index
    %c0_95 = arith.constant 0 : index
    %c0_96 = arith.constant 0 : index
    %297 = vector.load %arg6[%296, %c0_95, %c0_96] : memref<8x2x32xf32, #tpu.memory_space<vmem>>, vector<1x2x32xf32>
    %298 = vector.shape_cast %297 : vector<1x2x32xf32> to vector<2x32xf32>
    %299 = vector.shape_cast %289 : vector<2x32xf32> to vector<1x2x32xf32>
    tpu.vector_store %arg6[%296, %c0_95, %c0_96], %299 {strides = array<i32>} : memref<8x2x32xf32, #tpu.memory_space<vmem>>, vector<1x2x32xf32>,
    %c7_i32 = arith.constant 7 : i32
    %300 = arith.index_cast %c7_i32 : i32 to index
    %c0_97 = arith.constant 0 : index
    %c0_98 = arith.constant 0 : index
    %301 = vector.load %arg1[%300, %c0_97, %c0_98] : memref<8x2x128xf32, #tpu.memory_space<vmem>>, vector<1x2x128xf32>
    %302 = vector.shape_cast %301 : vector<1x2x128xf32> to vector<2x128xf32>
    %303 = arith.truncf %291 : vector<2x32xf32> to vector<2x32xbf16>
    %cst_99 = arith.constant dense<0.000000e+00> : vector<2x128xf32>
    %304 = tpu.matmul %303, %3, %cst_99 {dimension_numbers = #tpu.dot_dimension_numbers<[1], [0], [0], [1], [0, 0, 1, 1], [], []>} : vector<2x32xbf16>, vector<32x128xbf16>, vector<2x128xf32> -> vector<2x128xf32>
    %305 = arith.addf %302, %304 : vector<2x128xf32>
    %306 = vector.extract_strided_slice %305 {offsets = [0, 0], sizes = [2, 32], strides = [1, 1]} : vector<2x128xf32> to vector<2x32xf32>
    %cst_100 = arith.constant 0.000000e+00 : f32
    %307 = vector.broadcast %cst_100 : f32 to vector<2x32xf32>
    %308 = arith.subf %307, %306 : vector<2x32xf32>
    %309 = math.exp %308 : vector<2x32xf32>
    %cst_101 = arith.constant 1.000000e+00 : f32
    %310 = vector.broadcast %cst_101 : f32 to vector<2x32xf32>
    %311 = arith.addf %310, %309 : vector<2x32xf32>
    %312 = tpu.reciprocal %311 {approx = true} : vector<2x32xf32> -> vector<2x32xf32>
    %313 = vector.extract_strided_slice %305 {offsets = [0, 32], sizes = [2, 32], strides = [1, 1]} : vector<2x128xf32> to vector<2x32xf32>
    %cst_102 = arith.constant 0.000000e+00 : f32
    %314 = vector.broadcast %cst_102 : f32 to vector<2x32xf32>
    %315 = arith.subf %314, %313 : vector<2x32xf32>
    %316 = math.exp %315 : vector<2x32xf32>
    %cst_103 = arith.constant 1.000000e+00 : f32
    %317 = vector.broadcast %cst_103 : f32 to vector<2x32xf32>
    %318 = arith.addf %317, %316 : vector<2x32xf32>
    %319 = tpu.reciprocal %318 {approx = true} : vector<2x32xf32> -> vector<2x32xf32>
    %320 = vector.extract_strided_slice %305 {offsets = [0, 64], sizes = [2, 32], strides = [1, 1]} : vector<2x128xf32> to vector<2x32xf32>
    %321 = math.tanh %320 : vector<2x32xf32>
    %322 = vector.extract_strided_slice %305 {offsets = [0, 96], sizes = [2, 32], strides = [1, 1]} : vector<2x128xf32> to vector<2x32xf32>
    %cst_104 = arith.constant 0.000000e+00 : f32
    %323 = vector.broadcast %cst_104 : f32 to vector<2x32xf32>
    %324 = arith.subf %323, %322 : vector<2x32xf32>
    %325 = math.exp %324 : vector<2x32xf32>
    %cst_105 = arith.constant 1.000000e+00 : f32
    %326 = vector.broadcast %cst_105 : f32 to vector<2x32xf32>
    %327 = arith.addf %326, %325 : vector<2x32xf32>
    %328 = tpu.reciprocal %327 {approx = true} : vector<2x32xf32> -> vector<2x32xf32>
    %329 = arith.mulf %312, %289 : vector<2x32xf32>
    %330 = arith.mulf %319, %321 : vector<2x32xf32>
    %331 = arith.addf %329, %330 : vector<2x32xf32>
    %332 = math.tanh %331 : vector<2x32xf32>
    %333 = arith.mulf %328, %332 : vector<2x32xf32>
    %334 = arith.index_cast %c7_i32 : i32 to index
    %c0_106 = arith.constant 0 : index
    %c0_107 = arith.constant 0 : index
    %335 = vector.load %arg5[%334, %c0_106, %c0_107] : memref<8x2x32xf32, #tpu.memory_space<vmem>>, vector<1x2x32xf32>
    %336 = vector.shape_cast %335 : vector<1x2x32xf32> to vector<2x32xf32>
    %337 = vector.shape_cast %333 : vector<2x32xf32> to vector<1x2x32xf32>
    tpu.vector_store %arg5[%334, %c0_106, %c0_107], %337 {strides = array<i32>} : memref<8x2x32xf32, #tpu.memory_space<vmem>>, vector<1x2x32xf32>,
    %338 = arith.index_cast %c7_i32 : i32 to index
    %c0_108 = arith.constant 0 : index
    %c0_109 = arith.constant 0 : index
    %339 = vector.load %arg6[%338, %c0_108, %c0_109] : memref<8x2x32xf32, #tpu.memory_space<vmem>>, vector<1x2x32xf32>
    %340 = vector.shape_cast %339 : vector<1x2x32xf32> to vector<2x32xf32>
    %341 = vector.shape_cast %331 : vector<2x32xf32> to vector<1x2x32xf32>
    tpu.vector_store %arg6[%338, %c0_108, %c0_109], %341 {strides = array<i32>} : memref<8x2x32xf32, #tpu.memory_space<vmem>>, vector<1x2x32xf32>,
    %c8_i32 = arith.constant 8 : i32
    %c0_110 = arith.constant 0 : index
    %c0_111 = arith.constant 0 : index
    %342 = vector.load %arg7[%c0_110, %c0_111] : memref<2x32xf32, #tpu.memory_space<vmem>>, vector<2x32xf32>
    tpu.vector_store %arg7[%c0_110, %c0_111], %333 {strides = array<i32>} : memref<2x32xf32, #tpu.memory_space<vmem>>, vector<2x32xf32>,
    %c0_112 = arith.constant 0 : index
    %c0_113 = arith.constant 0 : index
    %343 = vector.load %arg8[%c0_112, %c0_113] : memref<2x32xf32, #tpu.memory_space<vmem>>, vector<2x32xf32>
    tpu.vector_store %arg8[%c0_112, %c0_113], %331 {strides = array<i32>} : memref<2x32xf32, #tpu.memory_space<vmem>>, vector<2x32xf32>,
    return
  }
  func.func @transform_0(%arg0: i32) -> (i32, i32, i32) {
    %c0_i32 = arith.constant 0 : i32
    %c0_i32_0 = arith.constant 0 : i32
    %c0_i32_1 = arith.constant 0 : i32
    return %arg0, %c0_i32, %c0_i32_0 : i32, i32, i32
  }
  func.func @transform_1(%arg0: i32) -> (i32, i32) {
    %c0_i32 = arith.constant 0 : i32
    %c0_i32_0 = arith.constant 0 : i32
    %c0_i32_1 = arith.constant 0 : i32
    return %c0_i32, %c0_i32_0 : i32, i32
  }
  func.func @transform_2(%arg0: i32) -> (i32, i32) {
    %c0_i32 = arith.constant 0 : i32
    %c0_i32_0 = arith.constant 0 : i32
    %c0_i32_1 = arith.constant 0 : i32
    return %c0_i32, %c0_i32_0 : i32, i32
  }
  func.func @transform_3(%arg0: i32) -> (i32, i32) {
    %c0_i32 = arith.constant 0 : i32
    %c0_i32_0 = arith.constant 0 : i32
    %c0_i32_1 = arith.constant 0 : i32
    return %c0_i32, %c0_i32_0 : i32, i32
  }
  func.func @transform_4(%arg0: i32) -> (i32, i32, i32) {
    %c0_i32 = arith.constant 0 : i32
    %c0_i32_0 = arith.constant 0 : i32
    %c0_i32_1 = arith.constant 0 : i32
    return %arg0, %c0_i32, %c0_i32_0 : i32, i32, i32
  }
  func.func @transform_5(%arg0: i32) -> (i32, i32, i32) {
    %c0_i32 = arith.constant 0 : i32
    %c0_i32_0 = arith.constant 0 : i32
    %c0_i32_1 = arith.constant 0 : i32
    return %arg0, %c0_i32, %c0_i32_0 : i32, i32, i32
  }
}

</mosaic_0001>

<llo_original>
// kernel: tpu_custom_call.1
$region0: #{tpu_custom_call.1}
  #allocation0 [shape = 'u32[]', space=smem, size = 0x4, offset = 0x4, fixed_abs, tag = 'smem constant byte address 0x4 - core index']
  #allocation1 [shape = 'u32[72,128]{1,0:T(1,128)}', space=vmem, size = 0x9000, scoped, tag = 'internal scratch']
  #allocation2 [shape = 'f32[2,32]{1,0:T(2,128)}', space=vmem, size = 0x400, scoped, tag = 'scratch operand']
  #allocation3 [shape = 'f32[2,32]{1,0:T(2,128)}', space=vmem, size = 0x400, scoped, tag = 'scratch operand']
  %s0 = inlined_call_operand.hbm [shape: f32[8,2,128], index: 0, kind: input, shape index: {}]
  %s1 = inlined_call_operand.hbm [shape: bf16[32,128], index: 1, kind: input, shape index: {}]
  %s2 = inlined_call_operand.hbm [shape: f32[2,32], index: 2, kind: input, shape index: {}]
  %s3 = inlined_call_operand.vmem [shape: f32[2,32], index: 3, kind: input, shape index: {}]
  %s4 = inlined_call_operand.hbm [shape: f32[8,2,32], index: 4, kind: output, shape index: {0}]
  %s5 = inlined_call_operand.hbm [shape: f32[8,2,32], index: 5, kind: output, shape index: {1}]
  %6 = xla_tuple %s4, %s5
  %s7 = sld [smem:[#allocation0]]
  $region50: #{tpu_custom_call.1} parent=0
    _
  %s9 = ssub.s32 1, %s7
  %s10 = scalar_select 0, %s9, %s7
  $region1: #{tpu_custom_call.1} parent=0
    #allocation4 [shape = 'u8[8192]{0}', space=vmem, size = 0x2000, scoped, tag = 'input window, operand 0, single buffered']
    #allocation5 [shape = 's32[1]{0}', space=sflag, size = 0x4, scoped, tag = 'scoped memory for tpu_custom_call.1']
    #allocation6 [shape = 's32[1]{0}', space=sflag, size = 0x4, scoped, tag = 'scoped memory for tpu_custom_call.1']
    #allocation7 [shape = 'u8[8192]{0}', space=vmem, size = 0x2000, scoped, tag = 'input window, operand 1, single buffered']
    #allocation8 [shape = 's32[1]{0}', space=sflag, size = 0x4, scoped, tag = 'scoped memory for tpu_custom_call.1']
    #allocation9 [shape = 'u8[1024]{0}', space=vmem, size = 0x400, scoped, tag = 'input window, operand 2, single buffered']
    #allocation10 [shape = 'u8[8192]{0}', space=vmem, size = 0x2000, scoped, tag = 'output window, operand 0, single buffered']
    #allocation11 [shape = 'u8[8192]{0}', space=vmem, size = 0x2000, scoped, tag = 'output window, operand 1, single buffered']
    #allocation12 [shape = 's32[1]{0}', space=sflag, size = 0x4, scoped, tag = 'scoped memory for tpu_custom_call.1']
    %11 = vsyncpa [#allocation5], 0
    %12 = vsyncpa [#allocation8], 0
    %13 = vsyncpa [#allocation6], 0
    %14 = vsyncpa [#allocation12], 0
    // Predicated region
    $region2: #{tpu_custom_call.1} parent=1 // pred_check
      _
    $region3: #{tpu_custom_call.1} parent=1 // pred_check_branch
      %16 = sbr.rel (0) target = $region5
    $region4: #{tpu_custom_call.1} parent=1 // pred_region
      %18 = vsyncadd [#allocation5], 0
      %s19 = sshll.u32 %s0, 4
      %s20 = int_to_ptr.hbm [resolvable:$true] %s19
      %s21 = sshll.u32 [#allocation4], 4
      %s22 = int_to_ptr.vmem [resolvable:$true] %s21
      %27 = dma.hbm_to_vmem [thread:$0]  %s20, 256, %s22, [#allocation5], 32, 32, 2
    $region5: #{tpu_custom_call.1} parent=1 // pred_fallthru
      _
    // Predicated region
    $region6: #{tpu_custom_call.1} parent=1 // pred_check
      _
    $region7: #{tpu_custom_call.1} parent=1 // pred_check_branch
      %29 = sbr.rel (0) target = $region9
    $region8: #{tpu_custom_call.1} parent=1 // pred_region
      %31 = vsyncadd [#allocation8], 0
      %s32 = sshll.u32 %s1, 4
      %s33 = int_to_ptr.hbm [resolvable:$true] %s32
      %s34 = sshll.u32 [#allocation7], 4
      %s35 = int_to_ptr.vmem [resolvable:$true] %s34
      %40 = dma.hbm_to_vmem [thread:$0]  %s33, 256, %s35, [#allocation8], 64, 64, 4
    $region9: #{tpu_custom_call.1} parent=1 // pred_fallthru
      _
    // Predicated region
    $region10: #{tpu_custom_call.1} parent=1 // pred_check
      _
    $region11: #{tpu_custom_call.1} parent=1 // pred_check_branch
      %42 = sbr.rel (0) target = $region13
    $region12: #{tpu_custom_call.1} parent=1 // pred_region
      %44 = vsyncadd [#allocation8], 0
      %s46 = sshll.u32 %s2, 4
      %s47 = int_to_ptr.hbm [resolvable:$true] %s46
      %s48 = sshll.u32 [#allocation9], 4
      %s49 = int_to_ptr.vmem [resolvable:$true] %s48
      %51 = dma.hbm_to_vmem [thread:$0]  %s47, 32, %s49, [#allocation8]
    $region13: #{tpu_custom_call.1} parent=1 // pred_fallthru
      _
    // Predicated region
    $region14: #{tpu_custom_call.1} parent=1 // pred_check
      _
    $region15: #{tpu_custom_call.1} parent=1 // pred_check_branch
      %53 = sbr.rel (0) target = $region17
    $region16: #{tpu_custom_call.1} parent=1 // pred_region
      _
    $region17: #{tpu_custom_call.1} parent=1 // pred_fallthru
      _
    // Predicated region
    $region18: #{tpu_custom_call.1} parent=1 // pred_check
      _
    $region19: #{tpu_custom_call.1} parent=1 // pred_check_branch
      %55 = sbr.rel (0) target = $region21
    $region20: #{tpu_custom_call.1} parent=1 // pred_region
      %57 = dma.done [#allocation5], 256
    $region21: #{tpu_custom_call.1} parent=1 // pred_fallthru
      _
    // Predicated region
    $region22: #{tpu_custom_call.1} parent=1 // pred_check
      _
    $region23: #{tpu_custom_call.1} parent=1 // pred_check_branch
      %59 = sbr.rel (0) target = $region25
    $region24: #{tpu_custom_call.1} parent=1 // pred_region
      %61 = dma.done [#allocation8], 256
    $region25: #{tpu_custom_call.1} parent=1 // pred_fallthru
      _
    // Predicated region
    $region26: #{tpu_custom_call.1} parent=1 // pred_check
      _
    $region27: #{tpu_custom_call.1} parent=1 // pred_check_branch
      %63 = sbr.rel (0) target = $region29
    $region28: #{tpu_custom_call.1} parent=1 // pred_region
      %65 = dma.done [#allocation8], 32
    $region29: #{tpu_custom_call.1} parent=1 // pred_fallthru
      _
    %p67 = scmp.eq.s32.totalorder 0, 0
    // Predicated region
    $region30: #{tpu_custom_call.1} parent=1 // pred_check
      %p68 = pneg %p67
    $region31: #{tpu_custom_call.1} parent=1 // pred_check_branch
      %70 = sbr.rel (%p68) target = $region33
    $region32: #{tpu_custom_call.1} parent=1 // pred_region
      %v71 = vld [vmem:[#allocation9] sm:$0x3]
      %vm72 = vcmask 254976
      %73 = vst.msk [vmem:[#allocation2] sm:$0x3] %vm72, %v71
      %v74 = vld [vmem:[%s3] sm:$0x3]
      %75 = vst.msk [vmem:[#allocation3] sm:$0x3] %vm72, %v74
    $region33: #{tpu_custom_call.1} parent=1 // pred_fallthru
      _
    %v76 = vld [vmem:[#allocation7] sm:$0xf]
    %v77 = vld [vmem:[#allocation7 + $0x4] sm:$0xf]
    %v78 = vld [vmem:[#allocation7 + $0x8] sm:$0xf]
    %v79 = vld [vmem:[#allocation7 + $0xc] sm:$0xf]
    %v80 = vld [vmem:[#allocation2] sm:$0x3]
    %v81 = vld [vmem:[#allocation3] sm:$0x3]
    %v82 = vld [vmem:[#allocation4] sm:$0x3]
    %v83 = vpack.c.bf16 %v80, %v80
    %v88 = vunpack.c.l.b16 %v76
    %v89 = vunpack.c.l.b16 %v77
    %v90 = vunpack.c.l.b16 %v78
    %v91 = vunpack.c.l.b16 %v79
    %v92 = vpack.c.b16 %v89, %v88
    %v93 = vpack.c.b16 %v91, %v90
    %vm96 = vcmask 261120
    %v98 = vsel %vm96, %v83, 0
    %100 = vmatpush.bf16.msra.mxu0 0
    %101 = vmatpush.bf16.msra.mxu0 0
    %102 = vmatpush.bf16.msra.mxu0 0
    %103 = vmatpush.bf16.msra.mxu0 0
    %104 = vmatpush.bf16.msra.mxu0 0
    %105 = vmatpush.bf16.msra.mxu0 0
    %106 = vmatpush.bf16.msra.mxu0 %v93
    %107 = vmatpush.bf16.msra.mxu0 %v92
    %108 = vmatmul.bf16.gmra.mxu0 %v98
    %v109 = vpop.f32.mrf.mxu0
    %v110 = vadd.f32 0.0, %v109
    %v111 = vpop.f32.mrf.mxu0
    %112 = vdwg.mxu0
    %v113 = vadd.f32 %v82, %v110
    %v114 = vsub.f32 0.0, %v113
    %v115 = vmul.f32 %v114, 1.442695
    %v116 = vpow.pop %v115
    %v117 = vadd.f32 %v116, 1.0
    %v118 = vrcp.pop %v117
    %v119 = vtanh.pop %v113
    %v120 = vmul.f32 %v118, %v81
    %122 = vrot.lane.b32.xlu0 %v119, 96
    %v123 = vpop.permute.xlu0 %122
    %v125 = vmul.f32 %v118, %v123
    %127 = vrot.lane.b32.xlu0 %v125, 96
    %v128 = vpop.permute.xlu0 %127
    %v130 = vadd.f32 %v120, %v128
    %v131 = vtanh.pop %v130
    %133 = vrot.lane.b32.xlu0 %v131, 96
    %v134 = vpop.permute.xlu0 %133
    %v136 = vmul.f32 %v118, %v134
    %138 = vrot.lane.b32.xlu0 %v136, 32
    %v139 = vpop.permute.xlu0 %138
    %vm141 = vcmask 254976
    %142 = vst.msk [vmem:[#allocation10] sm:$0x3] %vm141, %v139
    %143 = vst.msk [vmem:[#allocation11] sm:$0x3] %vm141, %v130
    %s144 = scalar_lea.vmem [#allocation4], 2
    %v145 = vld [vmem:[%s144] sm:$0x3]
    %v146 = vpack.c.bf16 %v136, %v136
    %148 = vrot.lane.b32.xlu0 %v146, 32
    %v149 = vpop.permute.xlu0 %148
    %v151 = vsel %vm96, %v149, 0
    %153 = vmatpush.bf16.msra.mxu0 0
    %154 = vmatpush.bf16.msra.mxu0 0
    %155 = vmatpush.bf16.msra.mxu0 0
    %156 = vmatpush.bf16.msra.mxu0 0
    %157 = vmatpush.bf16.msra.mxu0 0
    %158 = vmatpush.bf16.msra.mxu0 0
    %159 = vmatpush.bf16.msra.mxu0 %v93
    %160 = vmatpush.bf16.msra.mxu0 %v92
    %161 = vmatmul.bf16.gmra.mxu0 %v151
    %v162 = vpop.f32.mrf.mxu0
    %v163 = vadd.f32 0.0, %v162
    %v164 = vpop.f32.mrf.mxu0
    %165 = vdwg.mxu0
    %v166 = vadd.f32 %v145, %v163
    %v167 = vsub.f32 0.0, %v166
    %v168 = vmul.f32 %v167, 1.442695
    %v169 = vpow.pop %v168
    %v170 = vadd.f32 %v169, 1.0
    %v171 = vrcp.pop %v170
    %v172 = vtanh.pop %v166
    %v173 = vmul.f32 %v171, %v130
    %175 = vrot.lane.b32.xlu0 %v172, 96
    %v176 = vpop.permute.xlu0 %175
    %v178 = vmul.f32 %v171, %v176
    %180 = vrot.lane.b32.xlu0 %v178, 96
    %v181 = vpop.permute.xlu0 %180
    %v183 = vadd.f32 %v173, %v181
    %v184 = vtanh.pop %v183
    %186 = vrot.lane.b32.xlu0 %v184, 96
    %v187 = vpop.permute.xlu0 %186
    %v189 = vmul.f32 %v171, %v187
    %191 = vrot.lane.b32.xlu0 %v189, 32
    %v192 = vpop.permute.xlu0 %191
    %s194 = scalar_lea.vmem [#allocation10], 2
    %195 = vst.msk [vmem:[%s194] sm:$0x3] %vm141, %v192
    %s196 = scalar_lea.vmem [#allocation11], 2
    %197 = vst.msk [vmem:[%s196] sm:$0x3] %vm141, %v183
    %s198 = scalar_lea.vmem [#allocation4], 4
    %v199 = vld [vmem:[%s198] sm:$0x3]
    %v200 = vpack.c.bf16 %v189, %v189
    %202 = vrot.lane.b32.xlu0 %v200, 32
    %v203 = vpop.permute.xlu0 %202
    %v205 = vsel %vm96, %v203, 0
    %207 = vmatpush.bf16.msra.mxu0 0
    %208 = vmatpush.bf16.msra.mxu0 0
    %209 = vmatpush.bf16.msra.mxu0 0
    %210 = vmatpush.bf16.msra.mxu0 0
    %211 = vmatpush.bf16.msra.mxu0 0
    %212 = vmatpush.bf16.msra.mxu0 0
    %213 = vmatpush.bf16.msra.mxu0 %v93
    %214 = vmatpush.bf16.msra.mxu0 %v92
    %215 = vmatmul.bf16.gmra.mxu0 %v205
    %v216 = vpop.f32.mrf.mxu0
    %v217 = vadd.f32 0.0, %v216
    %v218 = vpop.f32.mrf.mxu0
    %219 = vdwg.mxu0
    %v220 = vadd.f32 %v199, %v217
    %v221 = vsub.f32 0.0, %v220
    %v222 = vmul.f32 %v221, 1.442695
    %v223 = vpow.pop %v222
    %v224 = vadd.f32 %v223, 1.0
    %v225 = vrcp.pop %v224
    %v226 = vtanh.pop %v220
    %v227 = vmul.f32 %v225, %v183
    %229 = vrot.lane.b32.xlu0 %v226, 96
    %v230 = vpop.permute.xlu0 %229
    %v232 = vmul.f32 %v225, %v230
    %234 = vrot.lane.b32.xlu0 %v232, 96
    %v235 = vpop.permute.xlu0 %234
    %v237 = vadd.f32 %v227, %v235
    %v238 = vtanh.pop %v237
    %240 = vrot.lane.b32.xlu0 %v238, 96
    %v241 = vpop.permute.xlu0 %240
    %v243 = vmul.f32 %v225, %v241
    %245 = vrot.lane.b32.xlu0 %v243, 32
    %v246 = vpop.permute.xlu0 %245
    %s248 = scalar_lea.vmem [#allocation10], 4
    %249 = vst.msk [vmem:[%s248] sm:$0x3] %vm141, %v246
    %s250 = scalar_lea.vmem [#allocation11], 4
    %251 = vst.msk [vmem:[%s250] sm:$0x3] %vm141, %v237
    %s252 = scalar_lea.vmem [#allocation4], 6
    %v253 = vld [vmem:[%s252] sm:$0x3]
    %v254 = vpack.c.bf16 %v243, %v243
    %256 = vrot.lane.b32.xlu0 %v254, 32
    %v257 = vpop.permute.xlu0 %256
    %v259 = vsel %vm96, %v257, 0
    %261 = vmatpush.bf16.msra.mxu0 0
    %262 = vmatpush.bf16.msra.mxu0 0
    %263 = vmatpush.bf16.msra.mxu0 0
    %264 = vmatpush.bf16.msra.mxu0 0
    %265 = vmatpush.bf16.msra.mxu0 0
    %266 = vmatpush.bf16.msra.mxu0 0
    %267 = vmatpush.bf16.msra.mxu0 %v93
    %268 = vmatpush.bf16.msra.mxu0 %v92
    %269 = vmatmul.bf16.gmra.mxu0 %v259
    %v270 = vpop.f32.mrf.mxu0
    %v271 = vadd.f32 0.0, %v270
    %v272 = vpop.f32.mrf.mxu0
    %273 = vdwg.mxu0
    %v274 = vadd.f32 %v253, %v271
    %v275 = vsub.f32 0.0, %v274
    %v276 = vmul.f32 %v275, 1.442695
    %v277 = vpow.pop %v276
    %v278 = vadd.f32 %v277, 1.0
    %v279 = vrcp.pop %v278
    %v280 = vtanh.pop %v274
    %v281 = vmul.f32 %v279, %v237
    %283 = vrot.lane.b32.xlu0 %v280, 96
    %v284 = vpop.permute.xlu0 %283
    %v286 = vmul.f32 %v279, %v284
    %288 = vrot.lane.b32.xlu0 %v286, 96
    %v289 = vpop.permute.xlu0 %288
    %v291 = vadd.f32 %v281, %v289
    %v292 = vtanh.pop %v291
    %294 = vrot.lane.b32.xlu0 %v292, 96
    %v295 = vpop.permute.xlu0 %294
    %v297 = vmul.f32 %v279, %v295
    %299 = vrot.lane.b32.xlu0 %v297, 32
    %v300 = vpop.permute.xlu0 %299
    %s302 = scalar_lea.vmem [#allocation10], 6
    %303 = vst.msk [vmem:[%s302] sm:$0x3] %vm141, %v300
    %s304 = scalar_lea.vmem [#allocation11], 6
    %305 = vst.msk [vmem:[%s304] sm:$0x3] %vm141, %v291
    %s306 = scalar_lea.vmem [#allocation4], 8
    %v307 = vld [vmem:[%s306] sm:$0x3]
    %v308 = vpack.c.bf16 %v297, %v297
    %310 = vrot.lane.b32.xlu0 %v308, 32
    %v311 = vpop.permute.xlu0 %310
    %v313 = vsel %vm96, %v311, 0
    %315 = vmatpush.bf16.msra.mxu0 0
    %316 = vmatpush.bf16.msra.mxu0 0
    %317 = vmatpush.bf16.msra.mxu0 0
    %318 = vmatpush.bf16.msra.mxu0 0
    %319 = vmatpush.bf16.msra.mxu0 0
    %320 = vmatpush.bf16.msra.mxu0 0
    %321 = vmatpush.bf16.msra.mxu0 %v93
    %322 = vmatpush.bf16.msra.mxu0 %v92
    %323 = vmatmul.bf16.gmra.mxu0 %v313
    %v324 = vpop.f32.mrf.mxu0
    %v325 = vadd.f32 0.0, %v324
    %v326 = vpop.f32.mrf.mxu0
    %327 = vdwg.mxu0
    %v328 = vadd.f32 %v307, %v325
    %v329 = vsub.f32 0.0, %v328
    %v330 = vmul.f32 %v329, 1.442695
    %v331 = vpow.pop %v330
    %v332 = vadd.f32 %v331, 1.0
    %v333 = vrcp.pop %v332
    %v334 = vtanh.pop %v328
    %v335 = vmul.f32 %v333, %v291
    %337 = vrot.lane.b32.xlu0 %v334, 96
    %v338 = vpop.permute.xlu0 %337
    %v340 = vmul.f32 %v333, %v338
    %342 = vrot.lane.b32.xlu0 %v340, 96
    %v343 = vpop.permute.xlu0 %342
    %v345 = vadd.f32 %v335, %v343
    %v346 = vtanh.pop %v345
    %348 = vrot.lane.b32.xlu0 %v346, 96
    %v349 = vpop.permute.xlu0 %348
    %v351 = vmul.f32 %v333, %v349
    %353 = vrot.lane.b32.xlu0 %v351, 32
    %v354 = vpop.permute.xlu0 %353
    %s356 = scalar_lea.vmem [#allocation10], 8
    %357 = vst.msk [vmem:[%s356] sm:$0x3] %vm141, %v354
    %s358 = scalar_lea.vmem [#allocation11], 8
    %359 = vst.msk [vmem:[%s358] sm:$0x3] %vm141, %v345
    %s360 = scalar_lea.vmem [#allocation4], 10
    %v361 = vld [vmem:[%s360] sm:$0x3]
    %v362 = vpack.c.bf16 %v351, %v351
    %364 = vrot.lane.b32.xlu0 %v362, 32
    %v365 = vpop.permute.xlu0 %364
    %v367 = vsel %vm96, %v365, 0
    %369 = vmatpush.bf16.msra.mxu0 0
    %370 = vmatpush.bf16.msra.mxu0 0
    %371 = vmatpush.bf16.msra.mxu0 0
    %372 = vmatpush.bf16.msra.mxu0 0
    %373 = vmatpush.bf16.msra.mxu0 0
    %374 = vmatpush.bf16.msra.mxu0 0
    %375 = vmatpush.bf16.msra.mxu0 %v93
    %376 = vmatpush.bf16.msra.mxu0 %v92
    %377 = vmatmul.bf16.gmra.mxu0 %v367
    %v378 = vpop.f32.mrf.mxu0
    %v379 = vadd.f32 0.0, %v378
    %v380 = vpop.f32.mrf.mxu0
    %381 = vdwg.mxu0
    %v382 = vadd.f32 %v361, %v379
    %v383 = vsub.f32 0.0, %v382
    %v384 = vmul.f32 %v383, 1.442695
    %v385 = vpow.pop %v384
    %v386 = vadd.f32 %v385, 1.0
    %v387 = vrcp.pop %v386
    %v388 = vtanh.pop %v382
    %v389 = vmul.f32 %v387, %v345
    %391 = vrot.lane.b32.xlu0 %v388, 96
    %v392 = vpop.permute.xlu0 %391
    %v394 = vmul.f32 %v387, %v392
    %396 = vrot.lane.b32.xlu0 %v394, 96
    %v397 = vpop.permute.xlu0 %396
    %v399 = vadd.f32 %v389, %v397
    %v400 = vtanh.pop %v399
    %402 = vrot.lane.b32.xlu0 %v400, 96
    %v403 = vpop.permute.xlu0 %402
    %v405 = vmul.f32 %v387, %v403
    %407 = vrot.lane.b32.xlu0 %v405, 32
    %v408 = vpop.permute.xlu0 %407
    %s410 = scalar_lea.vmem [#allocation10], 10
    %411 = vst.msk [vmem:[%s410] sm:$0x3] %vm141, %v408
    %s412 = scalar_lea.vmem [#allocation11], 10
    %413 = vst.msk [vmem:[%s412] sm:$0x3] %vm141, %v399
    %s414 = scalar_lea.vmem [#allocation4], 12
    %v415 = vld [vmem:[%s414] sm:$0x3]
    %v416 = vpack.c.bf16 %v405, %v405
    %418 = vrot.lane.b32.xlu0 %v416, 32
    %v419 = vpop.permute.xlu0 %418
    %v421 = vsel %vm96, %v419, 0
    %423 = vmatpush.bf16.msra.mxu0 0
    %424 = vmatpush.bf16.msra.mxu0 0
    %425 = vmatpush.bf16.msra.mxu0 0
    %426 = vmatpush.bf16.msra.mxu0 0
    %427 = vmatpush.bf16.msra.mxu0 0
    %428 = vmatpush.bf16.msra.mxu0 0
    %429 = vmatpush.bf16.msra.mxu0 %v93
    %430 = vmatpush.bf16.msra.mxu0 %v92
    %431 = vmatmul.bf16.gmra.mxu0 %v421
    %v432 = vpop.f32.mrf.mxu0
    %v433 = vadd.f32 0.0, %v432
    %v434 = vpop.f32.mrf.mxu0
    %435 = vdwg.mxu0
    %v436 = vadd.f32 %v415, %v433
    %v437 = vsub.f32 0.0, %v436
    %v438 = vmul.f32 %v437, 1.442695
    %v439 = vpow.pop %v438
    %v440 = vadd.f32 %v439, 1.0
    %v441 = vrcp.pop %v440
    %v442 = vtanh.pop %v436
    %v443 = vmul.f32 %v441, %v399
    %445 = vrot.lane.b32.xlu0 %v442, 96
    %v446 = vpop.permute.xlu0 %445
    %v448 = vmul.f32 %v441, %v446
    %450 = vrot.lane.b32.xlu0 %v448, 96
    %v451 = vpop.permute.xlu0 %450
    %v453 = vadd.f32 %v443, %v451
    %v454 = vtanh.pop %v453
    %456 = vrot.lane.b32.xlu0 %v454, 96
    %v457 = vpop.permute.xlu0 %456
    %v459 = vmul.f32 %v441, %v457
    %461 = vrot.lane.b32.xlu0 %v459, 32
    %v462 = vpop.permute.xlu0 %461
    %s464 = scalar_lea.vmem [#allocation10], 12
    %465 = vst.msk [vmem:[%s464] sm:$0x3] %vm141, %v462
    %s466 = scalar_lea.vmem [#allocation11], 12
    %467 = vst.msk [vmem:[%s466] sm:$0x3] %vm141, %v453
    %s468 = scalar_lea.vmem [#allocation4], 14
    %v469 = vld [vmem:[%s468] sm:$0x3]
    %v470 = vpack.c.bf16 %v459, %v459
    %472 = vrot.lane.b32.xlu0 %v470, 32
    %v473 = vpop.permute.xlu0 %472
    %v475 = vsel %vm96, %v473, 0
    %477 = vmatpush.bf16.msra.mxu0 0
    %478 = vmatpush.bf16.msra.mxu0 0
    %479 = vmatpush.bf16.msra.mxu0 0
    %480 = vmatpush.bf16.msra.mxu0 0
    %481 = vmatpush.bf16.msra.mxu0 0
    %482 = vmatpush.bf16.msra.mxu0 0
    %483 = vmatpush.bf16.msra.mxu0 %v93
    %484 = vmatpush.bf16.msra.mxu0 %v92
    %485 = vmatmul.bf16.gmra.mxu0 %v475
    %v486 = vpop.f32.mrf.mxu0
    %v487 = vadd.f32 0.0, %v486
    %v488 = vpop.f32.mrf.mxu0
    %489 = vdwg.mxu0
    %v490 = vadd.f32 %v469, %v487
    %v491 = vsub.f32 0.0, %v490
    %v492 = vmul.f32 %v491, 1.442695
    %v493 = vpow.pop %v492
    %v494 = vadd.f32 %v493, 1.0
    %v495 = vrcp.pop %v494
    %v496 = vtanh.pop %v490
    %v497 = vmul.f32 %v495, %v453
    %499 = vrot.lane.b32.xlu0 %v496, 96
    %v500 = vpop.permute.xlu0 %499
    %v502 = vmul.f32 %v495, %v500
    %504 = vrot.lane.b32.xlu0 %v502, 96
    %v505 = vpop.permute.xlu0 %504
    %v507 = vadd.f32 %v497, %v505
    %v508 = vtanh.pop %v507
    %510 = vrot.lane.b32.xlu0 %v508, 96
    %v511 = vpop.permute.xlu0 %510
    %v513 = vmul.f32 %v495, %v511
    %515 = vrot.lane.b32.xlu0 %v513, 32
    %v516 = vpop.permute.xlu0 %515
    %s518 = scalar_lea.vmem [#allocation10], 14
    %519 = vst.msk [vmem:[%s518] sm:$0x3] %vm141, %v516
    %s520 = scalar_lea.vmem [#allocation11], 14
    %521 = vst.msk [vmem:[%s520] sm:$0x3] %vm141, %v507
    %522 = vst.msk [vmem:[#allocation2] sm:$0x3] %vm141, %v516
    %523 = vst.msk [vmem:[#allocation3] sm:$0x3] %vm141, %v507
    // Predicated region
    $region34: #{tpu_custom_call.1} parent=1 // pred_check
      _
    $region35: #{tpu_custom_call.1} parent=1 // pred_check_branch
      %525 = sbr.rel (0) target = $region37
    $region36: #{tpu_custom_call.1} parent=1 // pred_region
      %527 = vsyncadd [#allocation6], 0
      %s528 = sshll.u32 [#allocation10], 4
      %s529 = int_to_ptr.vmem [resolvable:$true] %s528
      %s530 = sshll.u32 %s4, 4
      %s531 = int_to_ptr.hbm [resolvable:$true] %s530
      %536 = dma.vmem_to_hbm [thread:$0]  %s529, 256, %s531, [#allocation6], 32, 32, 2
    $region37: #{tpu_custom_call.1} parent=1 // pred_fallthru
      _
    // Predicated region
    $region38: #{tpu_custom_call.1} parent=1 // pred_check
      _
    $region39: #{tpu_custom_call.1} parent=1 // pred_check_branch
      %538 = sbr.rel (0) target = $region41
    $region40: #{tpu_custom_call.1} parent=1 // pred_region
      %540 = vsyncadd [#allocation12], 0
      %s541 = sshll.u32 [#allocation11], 4
      %s542 = int_to_ptr.vmem [resolvable:$true] %s541
      %s543 = sshll.u32 %s5, 4
      %s544 = int_to_ptr.hbm [resolvable:$true] %s543
      %549 = dma.vmem_to_hbm [thread:$0]  %s542, 256, %s544, [#allocation12], 32, 32, 2
    $region41: #{tpu_custom_call.1} parent=1 // pred_fallthru
      _
    // Predicated region
    $region42: #{tpu_custom_call.1} parent=1 // pred_check
      _
    $region43: #{tpu_custom_call.1} parent=1 // pred_check_branch
      %551 = sbr.rel (0) target = $region45
    $region44: #{tpu_custom_call.1} parent=1 // pred_region
      %553 = dma.done [#allocation6], 256
    $region45: #{tpu_custom_call.1} parent=1 // pred_fallthru
      _
    // Predicated region
    $region46: #{tpu_custom_call.1} parent=1 // pred_check
      _
    $region47: #{tpu_custom_call.1} parent=1 // pred_check_branch
      %555 = sbr.rel (0) target = $region49
    $region48: #{tpu_custom_call.1} parent=1 // pred_region
      %557 = dma.done [#allocation12], 256
    $region49: #{tpu_custom_call.1} parent=1 // pred_fallthru
      _
    %558 = vsyncpa [#allocation5], 1
    %559 = vsyncpa [#allocation8], 1
    %560 = vsyncpa [#allocation6], 1
    %561 = vsyncpa [#allocation12], 1

</llo_original>
